<compile_context>
chip_gen: v7x
topology: tpu7x:2x2x1
jax: 0.10.0
libtpu: 0.0.40
codegen_flags: <defaults>
</compile_context>

<pallas_src>
import functools
import math

import jax
import jax.numpy as jnp
import numpy as np
from jax import lax
from jax.experimental import pallas as pl
from jax.experimental.pallas import tpu as pltpu


def _round_up(n, m):
    return ((n + m - 1) // m) * m


def _rnn_kernel(alpha_ref, x_ref, w_ih_ref, b_ref, w_hh_ref, w_fc_ref,
                b_fc_ref, out_ref, hid_ref, h_ref, *, out_size, unroll):
    """One (batch-tile, seq-tile) grid step.

    Shapes (float32; TB multiple of 8, H_pad/O_pad multiples of 128):
      alpha_ref: (1,)   SMEM    leak parameter (== 1.0 per RNN.__init__)
      x_ref:     (TS, TB, I)    input tile
      w_ih_ref:  (I, H_pad)     input->hidden weights (transposed)
      b_ref:     (1, H_pad)     b_ih + b_hh folded together
      w_hh_ref:  (H_pad, H_pad) hidden->hidden weights (transposed)
      w_fc_ref:  (H_pad, O_pad) readout weights (transposed, lane-padded)
      b_fc_ref:  (1, O_pad)     readout bias (lane-padded)
      out_ref:   (TS, TB, O)    output tile ("out", unpadded last dim)
      hid_ref:   (TS, TB, H_pad) output tile ("rnn_output"); also the
                                pre-activation staging buffer for this tile
      h_ref:     (TB, H_pad)    VMEM scratch: hidden state carried across
                                sequence tiles (zeroed at seq tile 0)
    """
    s = pl.program_id(1)

    @pl.when(s == 0)
    def _():
        h_ref[...] = jnp.zeros_like(h_ref)

    TS, TB, I = x_ref.shape
    H = w_hh_ref.shape[0]

    # ---- Hoisted input projection for the whole tile (biases folded). ------
    # Written straight into the hid output block (no extra scratch).
    x2 = x_ref[...].reshape(TS * TB, I)
    pre = jnp.dot(x2, w_ih_ref[...],
                  preferred_element_type=jnp.float32) + b_ref[...]
    hid_ref[...] = pre.reshape(TS, TB, H)

    w_hh = w_hh_ref[...]
    # Hoist the alpha scalar->vector broadcast out of the unrolled loop
    # (JAX does not CSE broadcast_in_dim).
    alpha_b = jnp.full((TB, H), alpha_ref[0], dtype=jnp.float32)

    # ---- Serial recurrence within the tile; h carried in vregs. ------------
    def step(j, h):
        # NOTE: the read of hid_ref[j] (pre-activation) must stay before the
        # write of h back to hid_ref[j] within the same step.
        pre_j = hid_ref[j] + jnp.dot(h, w_hh,
                                     preferred_element_type=jnp.float32)
        h_new = jnp.tanh(pre_j)
        h = h + alpha_b * (h_new - h)          # leaky update (alpha == 1)
        hid_ref[j] = h
        return h

    h_final = lax.fori_loop(0, TS, step, h_ref[...], unroll=unroll)
    h_ref[...] = h_final                       # carry to the next seq tile

    # ---- Per-tile readout Linear (lane-dense matmul, unpadded store). ------
    hid_all = hid_ref[...].reshape(TS * TB, H)
    out_full = jnp.dot(hid_all, w_fc_ref[...],
                       preferred_element_type=jnp.float32) + b_fc_ref[...]
    out_ref[...] = out_full[:, :out_size].reshape(TS, TB, out_size)


def rnn_forward(x, params, *, seq_tile=32, batch_tile=128, unroll=8):
    """x: (S, B, I).  Returns (out (S, B, O), rnn_output (S, B, H))."""
    S, B, I = x.shape
    W_ih = params["W_ih"]          # (H, I)
    W_hh = params["W_hh"]          # (H, H)
    W_fc = params["W_fc"]          # (O, H)
    H = W_hh.shape[0]
    O = W_fc.shape[0]

    # Tiling: batch -> sublane multiples, hidden/readout lanes -> 128.
    TS = max(1, min(seq_tile, S))
    S_pad = _round_up(S, TS)
    TB = min(_round_up(B, 8), batch_tile)
    B_pad = _round_up(B, TB)
    H_pad = _round_up(H, 128)
    O_pad = _round_up(O, 128)
    unroll_eff = max(1, min(unroll, TS))

    # Pad operands (zero padding of H/O lanes is exact; padded batch rows and
    # padded trailing time steps are independent junk, sliced off below).
    x_p = jnp.zeros((S_pad, B_pad, I), jnp.float32).at[:S, :B, :].set(x)
    w_ih_t = W_ih.T.astype(jnp.float32)                              # (I, H)
    w_ih_t = jnp.zeros((I, H_pad), jnp.float32).at[:, :H].set(w_ih_t)
    b = jnp.zeros((1, H_pad), jnp.float32).at[0, :H].set(
        params["b_ih"] + params["b_hh"])
    w_hh_t = jnp.zeros((H_pad, H_pad), jnp.float32).at[:H, :H].set(W_hh.T)
    w_fc_t = jnp.zeros((H_pad, O_pad), jnp.float32).at[:H, :O].set(W_fc.T)
    b_fc = jnp.zeros((1, O_pad), jnp.float32).at[0, :O].set(params["b_fc"])
    alpha_arr = jnp.reshape(params["alpha"].astype(jnp.float32), (1,))

    # VMEM budget sized from the actual buffers (double-buffered tiles).
    f32 = 4
    tile_bytes = f32 * (TS * TB * (I + H_pad + O))
    weight_bytes = f32 * (I * H_pad + H_pad * H_pad + H_pad * O_pad
                          + H_pad + O_pad)
    scratch_bytes = f32 * TB * H_pad
    vmem_limit = 2 * tile_bytes + 2 * weight_bytes + scratch_bytes + (4 << 20)
    vmem_limit = int(min(max(vmem_limit, 16 << 20), 64 << 20))

    kernel = functools.partial(_rnn_kernel, out_size=O, unroll=unroll_eff)

    grid_spec = pltpu.PrefetchScalarGridSpec(
        num_scalar_prefetch=1,
        grid=(B_pad // TB, S_pad // TS),
        in_specs=[
            pl.BlockSpec((TS, TB, I), lambda b, s, alpha: (s, b, 0)),       # x
            pl.BlockSpec((I, H_pad), lambda b, s, alpha: (0, 0)),           # W_ih^T
            pl.BlockSpec((1, H_pad), lambda b, s, alpha: (0, 0)),           # b_ih+b_hh
            pl.BlockSpec((H_pad, H_pad), lambda b, s, alpha: (0, 0)),       # W_hh^T
            pl.BlockSpec((H_pad, O_pad), lambda b, s, alpha: (0, 0)),       # W_fc^T
            pl.BlockSpec((1, O_pad), lambda b, s, alpha: (0, 0)),           # b_fc
        ],
        out_specs=(
            pl.BlockSpec((TS, TB, O), lambda b, s, alpha: (s, b, 0)),       # out
            pl.BlockSpec((TS, TB, H_pad), lambda b, s, alpha: (s, b, 0)),   # rnn_output
        ),
        scratch_shapes=[pltpu.VMEM((TB, H_pad), jnp.float32)],
    )

    out_p, hid_p = pl.pallas_call(
        kernel,
        out_shape=(jax.ShapeDtypeStruct((S_pad, B_pad, O), jnp.float32),
                   jax.ShapeDtypeStruct((S_pad, B_pad, H_pad), jnp.float32)),
        grid_spec=grid_spec,
        compiler_params=pltpu.CompilerParams(
            dimension_semantics=("parallel", "arbitrary"),
            vmem_limit_bytes=vmem_limit),
    )(alpha_arr, x_p, w_ih_t, b, w_hh_t, w_fc_t, b_fc)

    # Strip padding back off.
    return out_p[:S, :B, :], hid_p[:S, :B, :H]


rnn_forward_jit = jax.jit(rnn_forward,
                          static_argnames=("seq_tile", "batch_tile", "unroll"))


def reference_forward(x, params):
    """Pure-JAX transcription of RNN.forward (PyTorch semantics)."""
    W_ih, b_ih = params["W_ih"], params["b_ih"]
    W_hh, b_hh = params["W_hh"], params["b_hh"]
    W_fc, b_fc = params["W_fc"], params["b_fc"]
    alpha = params["alpha"]
    S, B, _ = x.shape
    H = W_hh.shape[0]

    h = jnp.zeros((B, H), jnp.float32)
    hs = []
    for j in range(S):
        h_new = jnp.tanh(x[j] @ W_ih.T + b_ih + h @ W_hh.T + b_hh)
        h = alpha * (h_new - h) + h
        hs.append(h)
    rnn_output = jnp.stack(hs, axis=0)
    out = rnn_output @ W_fc.T + b_fc
    return out, rnn_output


if __name__ == "__main__":
    # Small shapes consistent with the module constructor.
    input_size, hidden_size, output_size = 16, 32, 4
    S, B = 8, 2

    key = jax.random.PRNGKey(0)
    ks = jax.random.split(key, 8)

    def uni(k, shape, fan_in):
        bound = 1.0 / math.sqrt(fan_in)
        return jax.random.uniform(k, shape, jnp.float32, -bound, bound)

    # nn.RNNCell and nn.Linear default init: U(-1/sqrt(hidden), 1/sqrt(hidden)).
    params = {
        "W_ih": uni(ks[0], (hidden_size, input_size), hidden_size),
        "b_ih": uni(ks[1], (hidden_size,), hidden_size),
        "W_hh": uni(ks[2], (hidden_size, hidden_size), hidden_size),
        "b_hh": uni(ks[3], (hidden_size,), hidden_size),
        "W_fc": uni(ks[4], (output_size, hidden_size), hidden_size),
        "b_fc": uni(ks[5], (output_size,), hidden_size),
        "alpha": jnp.array(1.0, jnp.float32),   # RNN.__init__ forces alpha = 1
    }
    x = jax.random.normal(ks[6], (S, B, input_size), jnp.float32)

    out, rnn_output = rnn_forward_jit(x, params)
    jax.block_until_ready((out, rnn_output))

    out_ref_v, hid_ref_v = reference_forward(x, params)
    assert out.shape == (S, B, output_size)
    assert rnn_output.shape == (S, B, hidden_size)
    np.testing.assert_allclose(np.asarray(out), np.asarray(out_ref_v),
                               rtol=1e-4, atol=1e-5)
    np.testing.assert_allclose(np.asarray(rnn_output), np.asarray(hid_ref_v),
                               rtol=1e-4, atol=1e-5)
    print("KERNEL_OK")
</pallas_src>

<mosaic_0001>
module attributes {stable_mosaic.version = 11 : i64} {
  func.func @_rnn_kernel(%arg0: i32, %arg1: i32, %arg2: memref<1xf32, #tpu.memory_space<smem>>, %arg3: memref<8x8x16xf32, #tpu.memory_space<vmem>>, %arg4: memref<16x128xf32, #tpu.memory_space<vmem>>, %arg5: memref<1x128xf32, #tpu.memory_space<vmem>>, %arg6: memref<128x128xf32, #tpu.memory_space<vmem>>, %arg7: memref<128x128xf32, #tpu.memory_space<vmem>>, %arg8: memref<1x128xf32, #tpu.memory_space<vmem>>, %arg9: memref<8x8x4xf32, #tpu.memory_space<vmem>>, %arg10: memref<8x8x128xf32, #tpu.memory_space<vmem>>, %arg11: memref<8x128xf32, #tpu.memory_space<vmem>>) attributes {dimension_semantics = [#tpu.dimension_semantics<parallel>, #tpu.dimension_semantics<arbitrary>], iteration_bounds = array<i64: 1, 1>, scalar_prefetch = 1 : i64, scratch_operands = 1 : i64, tpu.core_type = #tpu.core_type<tc>, window_params = [{transform_indices = @transform_0, window_bounds = array<i64: 8, 8, 16>}, {pipeline_mode = #tpu.pipeline_mode<synchronous>, transform_indices = @transform_1, window_bounds = array<i64: 16, 128>}, {pipeline_mode = #tpu.pipeline_mode<synchronous>, transform_indices = @transform_2, window_bounds = array<i64: 1, 128>}, {pipeline_mode = #tpu.pipeline_mode<synchronous>, transform_indices = @transform_3, window_bounds = array<i64: 128, 128>}, {pipeline_mode = #tpu.pipeline_mode<synchronous>, transform_indices = @transform_4, window_bounds = array<i64: 128, 128>}, {pipeline_mode = #tpu.pipeline_mode<synchronous>, transform_indices = @transform_5, window_bounds = array<i64: 1, 128>}, {transform_indices = @transform_6, window_bounds = array<i64: 8, 8, 4>}, {transform_indices = @transform_7, window_bounds = array<i64: 8, 8, 128>}]} {
    %c0_i32 = arith.constant 0 : i32
    %0 = arith.cmpi eq, %arg1, %c0_i32 : i32
    %1 = arith.extui %0 : i1 to i32
    %c0_i32_0 = arith.constant 0 : i32
    %2 = arith.cmpi ne, %1, %c0_i32_0 : i32
    scf.if %2 {
      %cst_69 = arith.constant 0.000000e+00 : f32
      %131 = vector.broadcast %cst_69 : f32 to vector<8x128xf32>
      %c0_70 = arith.constant 0 : index
      %c0_71 = arith.constant 0 : index
      %132 = vector.load %arg11[%c0_70, %c0_71] : memref<8x128xf32, #tpu.memory_space<vmem>>, vector<8x128xf32>
      tpu.vector_store %arg11[%c0_70, %c0_71], %131 {strides = array<i32>} : memref<8x128xf32, #tpu.memory_space<vmem>>, vector<8x128xf32>,
    } else {
    }
    %c0 = arith.constant 0 : index
    %c0_1 = arith.constant 0 : index
    %c0_2 = arith.constant 0 : index
    %3 = vector.load %arg3[%c0, %c0_1, %c0_2] : memref<8x8x16xf32, #tpu.memory_space<vmem>>, vector<8x8x16xf32>
    %4 = vector.shape_cast %3 : vector<8x8x16xf32> to vector<64x16xf32>
    %c0_3 = arith.constant 0 : index
    %c0_4 = arith.constant 0 : index
    %5 = vector.load %arg4[%c0_3, %c0_4] : memref<16x128xf32, #tpu.memory_space<vmem>>, vector<16x128xf32>
    %cst = arith.constant dense<0.000000e+00> : vector<64x128xf32>
    %6 = tpu.matmul %4, %5, %cst {dimension_numbers = #tpu.dot_dimension_numbers<[1], [0], [0], [1], [0, 0, 1, 1], [], []>} : vector<64x16xf32>, vector<16x128xf32>, vector<64x128xf32> -> vector<64x128xf32>
    %c0_5 = arith.constant 0 : index
    %c0_6 = arith.constant 0 : index
    %7 = vector.load %arg5[%c0_5, %c0_6] : memref<1x128xf32, #tpu.memory_space<vmem>>, vector<1x128xf32>
    %8 = vector.broadcast %7 : vector<1x128xf32> to vector<64x128xf32>
    %9 = arith.addf %6, %8 : vector<64x128xf32>
    %10 = vector.shape_cast %9 : vector<64x128xf32> to vector<8x8x128xf32>
    %c0_7 = arith.constant 0 : index
    %c0_8 = arith.constant 0 : index
    %c0_9 = arith.constant 0 : index
    %11 = vector.load %arg10[%c0_7, %c0_8, %c0_9] : memref<8x8x128xf32, #tpu.memory_space<vmem>>, vector<8x8x128xf32>
    tpu.vector_store %arg10[%c0_7, %c0_8, %c0_9], %10 {strides = array<i32>} : memref<8x8x128xf32, #tpu.memory_space<vmem>>, vector<8x8x128xf32>,
    %c0_10 = arith.constant 0 : index
    %c0_11 = arith.constant 0 : index
    %12 = vector.load %arg6[%c0_10, %c0_11] : memref<128x128xf32, #tpu.memory_space<vmem>>, vector<128x128xf32>
    %c0_12 = arith.constant 0 : index
    %13 = memref.load %arg2[%c0_12] : memref<1xf32, #tpu.memory_space<smem>>
    %14 = vector.broadcast %13 : f32 to vector<8x128xf32>
    %c0_13 = arith.constant 0 : index
    %c0_14 = arith.constant 0 : index
    %15 = vector.load %arg11[%c0_13, %c0_14] : memref<8x128xf32, #tpu.memory_space<vmem>>, vector<8x128xf32>
    %c0_i32_15 = arith.constant 0 : i32
    %16 = arith.index_cast %c0_i32_15 : i32 to index
    %c0_16 = arith.constant 0 : index
    %c0_17 = arith.constant 0 : index
    %17 = vector.load %arg10[%16, %c0_16, %c0_17] : memref<8x8x128xf32, #tpu.memory_space<vmem>>, vector<1x8x128xf32>
    %18 = vector.shape_cast %17 : vector<1x8x128xf32> to vector<8x128xf32>
    %cst_18 = arith.constant dense<0.000000e+00> : vector<8x128xf32>
    %19 = tpu.matmul %15, %12, %cst_18 {dimension_numbers = #tpu.dot_dimension_numbers<[1], [0], [0], [1], [0, 0, 1, 1], [], []>} : vector<8x128xf32>, vector<128x128xf32>, vector<8x128xf32> -> vector<8x128xf32>
    %20 = arith.addf %18, %19 : vector<8x128xf32>
    %21 = math.tanh %20 : vector<8x128xf32>
    %22 = arith.subf %21, %15 : vector<8x128xf32>
    %23 = arith.mulf %14, %22 : vector<8x128xf32>
    %24 = arith.addf %15, %23 : vector<8x128xf32>
    %25 = arith.index_cast %c0_i32_15 : i32 to index
    %c0_19 = arith.constant 0 : index
    %c0_20 = arith.constant 0 : index
    %26 = vector.load %arg10[%25, %c0_19, %c0_20] : memref<8x8x128xf32, #tpu.memory_space<vmem>>, vector<1x8x128xf32>
    %27 = vector.shape_cast %26 : vector<1x8x128xf32> to vector<8x128xf32>
    %28 = vector.shape_cast %24 : vector<8x128xf32> to vector<1x8x128xf32>
    tpu.vector_store %arg10[%25, %c0_19, %c0_20], %28 {strides = array<i32>} : memref<8x8x128xf32, #tpu.memory_space<vmem>>, vector<1x8x128xf32>,
    %c1_i32 = arith.constant 1 : i32
    %29 = arith.index_cast %c1_i32 : i32 to index
    %c0_21 = arith.constant 0 : index
    %c0_22 = arith.constant 0 : index
    %30 = vector.load %arg10[%29, %c0_21, %c0_22] : memref<8x8x128xf32, #tpu.memory_space<vmem>>, vector<1x8x128xf32>
    %31 = vector.shape_cast %30 : vector<1x8x128xf32> to vector<8x128xf32>
    %cst_23 = arith.constant dense<0.000000e+00> : vector<8x128xf32>
    %32 = tpu.matmul %24, %12, %cst_23 {dimension_numbers = #tpu.dot_dimension_numbers<[1], [0], [0], [1], [0, 0, 1, 1], [], []>} : vector<8x128xf32>, vector<128x128xf32>, vector<8x128xf32> -> vector<8x128xf32>
    %33 = arith.addf %31, %32 : vector<8x128xf32>
    %34 = math.tanh %33 : vector<8x128xf32>
    %35 = arith.subf %34, %24 : vector<8x128xf32>
    %36 = arith.mulf %14, %35 : vector<8x128xf32>
    %37 = arith.addf %24, %36 : vector<8x128xf32>
    %38 = arith.index_cast %c1_i32 : i32 to index
    %c0_24 = arith.constant 0 : index
    %c0_25 = arith.constant 0 : index
    %39 = vector.load %arg10[%38, %c0_24, %c0_25] : memref<8x8x128xf32, #tpu.memory_space<vmem>>, vector<1x8x128xf32>
    %40 = vector.shape_cast %39 : vector<1x8x128xf32> to vector<8x128xf32>
    %41 = vector.shape_cast %37 : vector<8x128xf32> to vector<1x8x128xf32>
    tpu.vector_store %arg10[%38, %c0_24, %c0_25], %41 {strides = array<i32>} : memref<8x8x128xf32, #tpu.memory_space<vmem>>, vector<1x8x128xf32>,
    %c2_i32 = arith.constant 2 : i32
    %42 = arith.index_cast %c2_i32 : i32 to index
    %c0_26 = arith.constant 0 : index
    %c0_27 = arith.constant 0 : index
    %43 = vector.load %arg10[%42, %c0_26, %c0_27] : memref<8x8x128xf32, #tpu.memory_space<vmem>>, vector<1x8x128xf32>
    %44 = vector.shape_cast %43 : vector<1x8x128xf32> to vector<8x128xf32>
    %cst_28 = arith.constant dense<0.000000e+00> : vector<8x128xf32>
    %45 = tpu.matmul %37, %12, %cst_28 {dimension_numbers = #tpu.dot_dimension_numbers<[1], [0], [0], [1], [0, 0, 1, 1], [], []>} : vector<8x128xf32>, vector<128x128xf32>, vector<8x128xf32> -> vector<8x128xf32>
    %46 = arith.addf %44, %45 : vector<8x128xf32>
    %47 = math.tanh %46 : vector<8x128xf32>
    %48 = arith.subf %47, %37 : vector<8x128xf32>
    %49 = arith.mulf %14, %48 : vector<8x128xf32>
    %50 = arith.addf %37, %49 : vector<8x128xf32>
    %51 = arith.index_cast %c2_i32 : i32 to index
    %c0_29 = arith.constant 0 : index
    %c0_30 = arith.constant 0 : index
    %52 = vector.load %arg10[%51, %c0_29, %c0_30] : memref<8x8x128xf32, #tpu.memory_space<vmem>>, vector<1x8x128xf32>
    %53 = vector.shape_cast %52 : vector<1x8x128xf32> to vector<8x128xf32>
    %54 = vector.shape_cast %50 : vector<8x128xf32> to vector<1x8x128xf32>
    tpu.vector_store %arg10[%51, %c0_29, %c0_30], %54 {strides = array<i32>} : memref<8x8x128xf32, #tpu.memory_space<vmem>>, vector<1x8x128xf32>,
    %c3_i32 = arith.constant 3 : i32
    %55 = arith.index_cast %c3_i32 : i32 to index
    %c0_31 = arith.constant 0 : index
    %c0_32 = arith.constant 0 : index
    %56 = vector.load %arg10[%55, %c0_31, %c0_32] : memref<8x8x128xf32, #tpu.memory_space<vmem>>, vector<1x8x128xf32>
    %57 = vector.shape_cast %56 : vector<1x8x128xf32> to vector<8x128xf32>
    %cst_33 = arith.constant dense<0.000000e+00> : vector<8x128xf32>
    %58 = tpu.matmul %50, %12, %cst_33 {dimension_numbers = #tpu.dot_dimension_numbers<[1], [0], [0], [1], [0, 0, 1, 1], [], []>} : vector<8x128xf32>, vector<128x128xf32>, vector<8x128xf32> -> vector<8x128xf32>
    %59 = arith.addf %57, %58 : vector<8x128xf32>
    %60 = math.tanh %59 : vector<8x128xf32>
    %61 = arith.subf %60, %50 : vector<8x128xf32>
    %62 = arith.mulf %14, %61 : vector<8x128xf32>
    %63 = arith.addf %50, %62 : vector<8x128xf32>
    %64 = arith.index_cast %c3_i32 : i32 to index
    %c0_34 = arith.constant 0 : index
    %c0_35 = arith.constant 0 : index
    %65 = vector.load %arg10[%64, %c0_34, %c0_35] : memref<8x8x128xf32, #tpu.memory_space<vmem>>, vector<1x8x128xf32>
    %66 = vector.shape_cast %65 : vector<1x8x128xf32> to vector<8x128xf32>
    %67 = vector.shape_cast %63 : vector<8x128xf32> to vector<1x8x128xf32>
    tpu.vector_store %arg10[%64, %c0_34, %c0_35], %67 {strides = array<i32>} : memref<8x8x128xf32, #tpu.memory_space<vmem>>, vector<1x8x128xf32>,
    %c4_i32 = arith.constant 4 : i32
    %68 = arith.index_cast %c4_i32 : i32 to index
    %c0_36 = arith.constant 0 : index
    %c0_37 = arith.constant 0 : index
    %69 = vector.load %arg10[%68, %c0_36, %c0_37] : memref<8x8x128xf32, #tpu.memory_space<vmem>>, vector<1x8x128xf32>
    %70 = vector.shape_cast %69 : vector<1x8x128xf32> to vector<8x128xf32>
    %cst_38 = arith.constant dense<0.000000e+00> : vector<8x128xf32>
    %71 = tpu.matmul %63, %12, %cst_38 {dimension_numbers = #tpu.dot_dimension_numbers<[1], [0], [0], [1], [0, 0, 1, 1], [], []>} : vector<8x128xf32>, vector<128x128xf32>, vector<8x128xf32> -> vector<8x128xf32>
    %72 = arith.addf %70, %71 : vector<8x128xf32>
    %73 = math.tanh %72 : vector<8x128xf32>
    %74 = arith.subf %73, %63 : vector<8x128xf32>
    %75 = arith.mulf %14, %74 : vector<8x128xf32>
    %76 = arith.addf %63, %75 : vector<8x128xf32>
    %77 = arith.index_cast %c4_i32 : i32 to index
    %c0_39 = arith.constant 0 : index
    %c0_40 = arith.constant 0 : index
    %78 = vector.load %arg10[%77, %c0_39, %c0_40] : memref<8x8x128xf32, #tpu.memory_space<vmem>>, vector<1x8x128xf32>
    %79 = vector.shape_cast %78 : vector<1x8x128xf32> to vector<8x128xf32>
    %80 = vector.shape_cast %76 : vector<8x128xf32> to vector<1x8x128xf32>
    tpu.vector_store %arg10[%77, %c0_39, %c0_40], %80 {strides = array<i32>} : memref<8x8x128xf32, #tpu.memory_space<vmem>>, vector<1x8x128xf32>,
    %c5_i32 = arith.constant 5 : i32
    %81 = arith.index_cast %c5_i32 : i32 to index
    %c0_41 = arith.constant 0 : index
    %c0_42 = arith.constant 0 : index
    %82 = vector.load %arg10[%81, %c0_41, %c0_42] : memref<8x8x128xf32, #tpu.memory_space<vmem>>, vector<1x8x128xf32>
    %83 = vector.shape_cast %82 : vector<1x8x128xf32> to vector<8x128xf32>
    %cst_43 = arith.constant dense<0.000000e+00> : vector<8x128xf32>
    %84 = tpu.matmul %76, %12, %cst_43 {dimension_numbers = #tpu.dot_dimension_numbers<[1], [0], [0], [1], [0, 0, 1, 1], [], []>} : vector<8x128xf32>, vector<128x128xf32>, vector<8x128xf32> -> vector<8x128xf32>
    %85 = arith.addf %83, %84 : vector<8x128xf32>
    %86 = math.tanh %85 : vector<8x128xf32>
    %87 = arith.subf %86, %76 : vector<8x128xf32>
    %88 = arith.mulf %14, %87 : vector<8x128xf32>
    %89 = arith.addf %76, %88 : vector<8x128xf32>
    %90 = arith.index_cast %c5_i32 : i32 to index
    %c0_44 = arith.constant 0 : index
    %c0_45 = arith.constant 0 : index
    %91 = vector.load %arg10[%90, %c0_44, %c0_45] : memref<8x8x128xf32, #tpu.memory_space<vmem>>, vector<1x8x128xf32>
    %92 = vector.shape_cast %91 : vector<1x8x128xf32> to vector<8x128xf32>
    %93 = vector.shape_cast %89 : vector<8x128xf32> to vector<1x8x128xf32>
    tpu.vector_store %arg10[%90, %c0_44, %c0_45], %93 {strides = array<i32>} : memref<8x8x128xf32, #tpu.memory_space<vmem>>, vector<1x8x128xf32>,
    %c6_i32 = arith.constant 6 : i32
    %94 = arith.index_cast %c6_i32 : i32 to index
    %c0_46 = arith.constant 0 : index
    %c0_47 = arith.constant 0 : index
    %95 = vector.load %arg10[%94, %c0_46, %c0_47] : memref<8x8x128xf32, #tpu.memory_space<vmem>>, vector<1x8x128xf32>
    %96 = vector.shape_cast %95 : vector<1x8x128xf32> to vector<8x128xf32>
    %cst_48 = arith.constant dense<0.000000e+00> : vector<8x128xf32>
    %97 = tpu.matmul %89, %12, %cst_48 {dimension_numbers = #tpu.dot_dimension_numbers<[1], [0], [0], [1], [0, 0, 1, 1], [], []>} : vector<8x128xf32>, vector<128x128xf32>, vector<8x128xf32> -> vector<8x128xf32>
    %98 = arith.addf %96, %97 : vector<8x128xf32>
    %99 = math.tanh %98 : vector<8x128xf32>
    %100 = arith.subf %99, %89 : vector<8x128xf32>
    %101 = arith.mulf %14, %100 : vector<8x128xf32>
    %102 = arith.addf %89, %101 : vector<8x128xf32>
    %103 = arith.index_cast %c6_i32 : i32 to index
    %c0_49 = arith.constant 0 : index
    %c0_50 = arith.constant 0 : index
    %104 = vector.load %arg10[%103, %c0_49, %c0_50] : memref<8x8x128xf32, #tpu.memory_space<vmem>>, vector<1x8x128xf32>
    %105 = vector.shape_cast %104 : vector<1x8x128xf32> to vector<8x128xf32>
    %106 = vector.shape_cast %102 : vector<8x128xf32> to vector<1x8x128xf32>
    tpu.vector_store %arg10[%103, %c0_49, %c0_50], %106 {strides = array<i32>} : memref<8x8x128xf32, #tpu.memory_space<vmem>>, vector<1x8x128xf32>,
    %c7_i32 = arith.constant 7 : i32
    %107 = arith.index_cast %c7_i32 : i32 to index
    %c0_51 = arith.constant 0 : index
    %c0_52 = arith.constant 0 : index
    %108 = vector.load %arg10[%107, %c0_51, %c0_52] : memref<8x8x128xf32, #tpu.memory_space<vmem>>, vector<1x8x128xf32>
    %109 = vector.shape_cast %108 : vector<1x8x128xf32> to vector<8x128xf32>
    %cst_53 = arith.constant dense<0.000000e+00> : vector<8x128xf32>
    %110 = tpu.matmul %102, %12, %cst_53 {dimension_numbers = #tpu.dot_dimension_numbers<[1], [0], [0], [1], [0, 0, 1, 1], [], []>} : vector<8x128xf32>, vector<128x128xf32>, vector<8x128xf32> -> vector<8x128xf32>
    %111 = arith.addf %109, %110 : vector<8x128xf32>
    %112 = math.tanh %111 : vector<8x128xf32>
    %113 = arith.subf %112, %102 : vector<8x128xf32>
    %114 = arith.mulf %14, %113 : vector<8x128xf32>
    %115 = arith.addf %102, %114 : vector<8x128xf32>
    %116 = arith.index_cast %c7_i32 : i32 to index
    %c0_54 = arith.constant 0 : index
    %c0_55 = arith.constant 0 : index
    %117 = vector.load %arg10[%116, %c0_54, %c0_55] : memref<8x8x128xf32, #tpu.memory_space<vmem>>, vector<1x8x128xf32>
    %118 = vector.shape_cast %117 : vector<1x8x128xf32> to vector<8x128xf32>
    %119 = vector.shape_cast %115 : vector<8x128xf32> to vector<1x8x128xf32>
    tpu.vector_store %arg10[%116, %c0_54, %c0_55], %119 {strides = array<i32>} : memref<8x8x128xf32, #tpu.memory_space<vmem>>, vector<1x8x128xf32>,
    %c8_i32 = arith.constant 8 : i32
    %c0_56 = arith.constant 0 : index
    %c0_57 = arith.constant 0 : index
    %120 = vector.load %arg11[%c0_56, %c0_57] : memref<8x128xf32, #tpu.memory_space<vmem>>, vector<8x128xf32>
    tpu.vector_store %arg11[%c0_56, %c0_57], %115 {strides = array<i32>} : memref<8x128xf32, #tpu.memory_space<vmem>>, vector<8x128xf32>,
    %c0_58 = arith.constant 0 : index
    %c0_59 = arith.constant 0 : index
    %c0_60 = arith.constant 0 : index
    %121 = vector.load %arg10[%c0_58, %c0_59, %c0_60] : memref<8x8x128xf32, #tpu.memory_space<vmem>>, vector<8x8x128xf32>
    %122 = vector.shape_cast %121 : vector<8x8x128xf32> to vector<64x128xf32>
    %c0_61 = arith.constant 0 : index
    %c0_62 = arith.constant 0 : index
    %123 = vector.load %arg7[%c0_61, %c0_62] : memref<128x128xf32, #tpu.memory_space<vmem>>, vector<128x128xf32>
    %cst_63 = arith.constant dense<0.000000e+00> : vector<64x128xf32>
    %124 = tpu.matmul %122, %123, %cst_63 {dimension_numbers = #tpu.dot_dimension_numbers<[1], [0], [0], [1], [0, 0, 1, 1], [], []>} : vector<64x128xf32>, vector<128x128xf32>, vector<64x128xf32> -> vector<64x128xf32>
    %c0_64 = arith.constant 0 : index
    %c0_65 = arith.constant 0 : index
    %125 = vector.load %arg8[%c0_64, %c0_65] : memref<1x128xf32, #tpu.memory_space<vmem>>, vector<1x128xf32>
    %126 = vector.broadcast %125 : vector<1x128xf32> to vector<64x128xf32>
    %127 = arith.addf %124, %126 : vector<64x128xf32>
    %128 = vector.extract_strided_slice %127 {offsets = [0, 0], sizes = [64, 4], strides = [1, 1]} : vector<64x128xf32> to vector<64x4xf32>
    %129 = vector.shape_cast %128 : vector<64x4xf32> to vector<8x8x4xf32>
    %c0_66 = arith.constant 0 : index
    %c0_67 = arith.constant 0 : index
    %c0_68 = arith.constant 0 : index
    %130 = vector.load %arg9[%c0_66, %c0_67, %c0_68] : memref<8x8x4xf32, #tpu.memory_space<vmem>>, vector<8x8x4xf32>
    tpu.vector_store %arg9[%c0_66, %c0_67, %c0_68], %129 {strides = array<i32>} : memref<8x8x4xf32, #tpu.memory_space<vmem>>, vector<8x8x4xf32>,
    return
  }
  func.func @transform_0(%arg0: i32, %arg1: i32, %arg2: memref<1xf32, #tpu.memory_space<smem>>) -> (i32, i32, i32) {
    %c0_i32 = arith.constant 0 : i32
    %c0_i32_0 = arith.constant 0 : i32
    return %arg1, %arg0, %c0_i32 : i32, i32, i32
  }
  func.func @transform_1(%arg0: i32, %arg1: i32, %arg2: memref<1xf32, #tpu.memory_space<smem>>) -> (i32, i32) {
    %c0_i32 = arith.constant 0 : i32
    %c0_i32_0 = arith.constant 0 : i32
    %c0_i32_1 = arith.constant 0 : i32
    return %c0_i32, %c0_i32_0 : i32, i32
  }
  func.func @transform_2(%arg0: i32, %arg1: i32, %arg2: memref<1xf32, #tpu.memory_space<smem>>) -> (i32, i32) {
    %c0_i32 = arith.constant 0 : i32
    %c0_i32_0 = arith.constant 0 : i32
    %c0_i32_1 = arith.constant 0 : i32
    return %c0_i32, %c0_i32_0 : i32, i32
  }
  func.func @transform_3(%arg0: i32, %arg1: i32, %arg2: memref<1xf32, #tpu.memory_space<smem>>) -> (i32, i32) {
    %c0_i32 = arith.constant 0 : i32
    %c0_i32_0 = arith.constant 0 : i32
    %c0_i32_1 = arith.constant 0 : i32
    return %c0_i32, %c0_i32_0 : i32, i32
  }
  func.func @transform_4(%arg0: i32, %arg1: i32, %arg2: memref<1xf32, #tpu.memory_space<smem>>) -> (i32, i32) {
    %c0_i32 = arith.constant 0 : i32
    %c0_i32_0 = arith.constant 0 : i32
    %c0_i32_1 = arith.constant 0 : i32
    return %c0_i32, %c0_i32_0 : i32, i32
  }
  func.func @transform_5(%arg0: i32, %arg1: i32, %arg2: memref<1xf32, #tpu.memory_space<smem>>) -> (i32, i32) {
    %c0_i32 = arith.constant 0 : i32
    %c0_i32_0 = arith.constant 0 : i32
    %c0_i32_1 = arith.constant 0 : i32
    return %c0_i32, %c0_i32_0 : i32, i32
  }
  func.func @transform_6(%arg0: i32, %arg1: i32, %arg2: memref<1xf32, #tpu.memory_space<smem>>) -> (i32, i32, i32) {
    %c0_i32 = arith.constant 0 : i32
    %c0_i32_0 = arith.constant 0 : i32
    return %arg1, %arg0, %c0_i32 : i32, i32, i32
  }
  func.func @transform_7(%arg0: i32, %arg1: i32, %arg2: memref<1xf32, #tpu.memory_space<smem>>) -> (i32, i32, i32) {
    %c0_i32 = arith.constant 0 : i32
    %c0_i32_0 = arith.constant 0 : i32
    return %arg1, %arg0, %c0_i32 : i32, i32, i32
  }
}

</mosaic_0001>

<llo_original>
// kernel: rnn_forward.1
$region0: #{rnn_forward.1}
  #allocation0 [shape = 'u32[]', space=smem, size = 0x4, offset = 0x4, fixed_abs, tag = 'smem constant byte address 0x4 - core index']
  #allocation1 [shape = 'u32[144,128]{1,0:T(1,128)}', space=vmem, size = 0x12000, scoped, tag = 'internal scratch']
  #allocation2 [shape = 'f32[8,128]{1,0:T(8,128)}', space=vmem, size = 0x1000, scoped, tag = 'scratch operand']
  #allocation3 [shape = 's32[1]{0}', space=sflag, size = 0x4, scoped, tag = 'scoped memory for rnn_forward.1']
  #allocation4 [shape = 'f32[1]{0:T(128)S(6)}', space=smem, size = 0x200, scoped, tag = 'prefetched SMEM operand 0']
  %s0 = inlined_call_operand.<no memory space> [shape: f32[1], index: 0, kind: input, shape index: {}]
  %s1 = inlined_call_operand.vmem [shape: f32[8,8,16], index: 1, kind: input, shape index: {}]
  %s2 = inlined_call_operand.vmem [shape: f32[16,128], index: 2, kind: input, shape index: {}]
  %s3 = inlined_call_operand.vmem [shape: f32[1,128], index: 3, kind: input, shape index: {}]
  %s4 = inlined_call_operand.vmem [shape: f32[128,128], index: 4, kind: input, shape index: {}]
  %s5 = inlined_call_operand.vmem [shape: f32[128,128], index: 5, kind: input, shape index: {}]
  %s6 = inlined_call_operand.vmem [shape: f32[1,128], index: 6, kind: input, shape index: {}]
  %s7 = inlined_call_operand.vmem [shape: f32[8,8,4], index: 7, kind: output, shape index: {0}]
  %s8 = inlined_call_operand.vmem [shape: f32[8,8,128], index: 8, kind: output, shape index: {1}]
  %9 = xla_tuple %s7, %s8
  %s10 = sld [smem:[#allocation0]]
  $region46: #{rnn_forward.1} parent=0
    _
  %s12 = ssub.s32 1, %s10
  %s13 = scalar_select 0, %s12, %s10
  %14 = sst [smem:[#allocation4]] %s0
  // Predicated region
  $region2: #{rnn_forward.1} parent=0 // pred_check
    _
  $region3: #{rnn_forward.1} parent=0 // pred_check_branch
    %16 = sbr.rel (0) target = $region5
  $region4: #{rnn_forward.1} parent=0 // pred_region
    _
  $region5: #{rnn_forward.1} parent=0 // pred_fallthru
    _
  // Predicated region
  $region6: #{rnn_forward.1} parent=0 // pred_check
    _
  $region7: #{rnn_forward.1} parent=0 // pred_check_branch
    %18 = sbr.rel (0) target = $region9
  $region8: #{rnn_forward.1} parent=0 // pred_region
    _
  $region9: #{rnn_forward.1} parent=0 // pred_fallthru
    _
  // Predicated region
  $region10: #{rnn_forward.1} parent=0 // pred_check
    _
  $region11: #{rnn_forward.1} parent=0 // pred_check_branch
    %20 = sbr.rel (0) target = $region13
  $region12: #{rnn_forward.1} parent=0 // pred_region
    _
  $region13: #{rnn_forward.1} parent=0 // pred_fallthru
    _
  // Predicated region
  $region14: #{rnn_forward.1} parent=0 // pred_check
    _
  $region15: #{rnn_forward.1} parent=0 // pred_check_branch
    %22 = sbr.rel (0) target = $region17
  $region16: #{rnn_forward.1} parent=0 // pred_region
    _
  $region17: #{rnn_forward.1} parent=0 // pred_fallthru
    _
  // Predicated region
  $region18: #{rnn_forward.1} parent=0 // pred_check
    _
  $region19: #{rnn_forward.1} parent=0 // pred_check_branch
    %24 = sbr.rel (0) target = $region21
  $region20: #{rnn_forward.1} parent=0 // pred_region
    _
  $region21: #{rnn_forward.1} parent=0 // pred_fallthru
    _
  // Predicated region
  $region22: #{rnn_forward.1} parent=0 // pred_check
    _
  $region23: #{rnn_forward.1} parent=0 // pred_check_branch
    %26 = sbr.rel (0) target = $region25
  $region24: #{rnn_forward.1} parent=0 // pred_region
    _
  $region25: #{rnn_forward.1} parent=0 // pred_fallthru
    _
  %p27 = scmp.eq.s32.totalorder 0, 0
  // Predicated region
  $region26: #{rnn_forward.1} parent=0 // pred_check
    %p28 = pneg %p27
  $region27: #{rnn_forward.1} parent=0 // pred_check_branch
    %30 = sbr.rel (%p28) target = $region29
  $region28: #{rnn_forward.1} parent=0 // pred_region
    %31 = vst [vmem:[#allocation2] sm:$0xff] 0.0
  $region29: #{rnn_forward.1} parent=0 // pred_fallthru
    _
  %v32 = vld [vmem:[%s1] sm:$0xff]
  %v33 = vld [vmem:[%s1 + $0x8] sm:$0xff]
  %v34 = vld [vmem:[%s1 + $0x10] sm:$0xff]
  %v35 = vld [vmem:[%s1 + $0x18] sm:$0xff]
  %v36 = vld [vmem:[%s1 + $0x20] sm:$0xff]
  %v37 = vld [vmem:[%s1 + $0x28] sm:$0xff]
  %v38 = vld [vmem:[%s1 + $0x30] sm:$0xff]
  %v39 = vld [vmem:[%s1 + $0x38] sm:$0xff]
  %v40 = vld [vmem:[%s2] sm:$0xff]
  %v41 = vld [vmem:[%s2 + $0x8] sm:$0xff]
  %v42 = vld [vmem:[%s3] sm:$0x1]
  %v44 = vlaneseq
  %v45 = vshrl.u32 %v44, 7
  %v46 = vsub.s32 0, %v45
  %v47 = vrot.slane %v42, %v46
  %vm49 = vcmask 130048
  %v51 = vsel %vm49, %v32, 0
  %v54 = vsel %vm49, %v33, 0
  %v57 = vsel %vm49, %v34, 0
  %v60 = vsel %vm49, %v35, 0
  %v63 = vsel %vm49, %v36, 0
  %v66 = vsel %vm49, %v37, 0
  %v69 = vsel %vm49, %v38, 0
  %v72 = vsel %vm49, %v39, 0
  %74 = vmatprep.subr.mxu0 0.0
  %75 = vmatpush1.msra.mxu0 %v40
  %76 = vmatprep.subr.mxu0 0.0
  %77 = vmatpush1.msra.mxu0 %v41
  %78 = vmatprep.subr.mxu0 0.0
  %79 = vmatpush1.msra.mxu0 0.0
  %80 = vmatprep.subr.mxu0 0.0
  %81 = vmatpush1.msra.mxu0 0.0
  %82 = vmatprep.subr.mxu0 0.0
  %83 = vmatpush1.msra.mxu0 0.0
  %84 = vmatprep.subr.mxu0 0.0
  %85 = vmatpush1.msra.mxu0 0.0
  %86 = vmatprep.subr.mxu0 0.0
  %87 = vmatpush1.msra.mxu0 0.0
  %88 = vmatprep.subr.mxu0 0.0
  %89 = vmatpush1.msra.mxu0 0.0
  %90 = vmatprep.subr.mxu0 0.0
  %91 = vmatpush1.msra.mxu0 0.0
  %92 = vmatprep.subr.mxu0 0.0
  %93 = vmatpush1.msra.mxu0 0.0
  %94 = vmatprep.subr.mxu0 0.0
  %95 = vmatpush1.msra.mxu0 0.0
  %96 = vmatprep.subr.mxu0 0.0
  %97 = vmatpush1.msra.mxu0 0.0
  %98 = vmatprep.subr.mxu0 0.0
  %99 = vmatpush1.msra.mxu0 0.0
  %100 = vmatprep.subr.mxu0 0.0
  %101 = vmatpush1.msra.mxu0 0.0
  %102 = vmatprep.subr.mxu0 0.0
  %103 = vmatpush1.msra.mxu0 0.0
  %104 = vmatprep.subr.mxu0 0.0
  %105 = vmatpush1.msra.mxu0 0.0
  %106 = vmatprep.subr.mxu0 0.0
  %107 = vmatpush1.msra.mxu0 0.0
  %108 = vmatprep.subr.mxu0 0.0
  %109 = vmatpush1.msra.mxu0 0.0
  %110 = vmatprep.subr.mxu0 0.0
  %111 = vmatpush1.msra.mxu0 0.0
  %112 = vmatprep.subr.mxu0 0.0
  %113 = vmatpush1.msra.mxu0 0.0
  %114 = vmatprep.subr.mxu0 0.0
  %115 = vmatpush1.msra.mxu0 0.0
  %116 = vmatprep.subr.mxu0 0.0
  %117 = vmatpush1.msra.mxu0 0.0
  %118 = vmatprep.subr.mxu0 0.0
  %119 = vmatpush1.msra.mxu0 0.0
  %120 = vmatprep.subr.mxu0 0.0
  %121 = vmatpush1.msra.mxu0 0.0
  %122 = vmatprep.subr.mxu0 0.0
  %123 = vmatpush1.msra.mxu0 0.0
  %124 = vmatprep.subr.mxu0 0.0
  %125 = vmatpush1.msra.mxu0 0.0
  %126 = vmatprep.subr.mxu0 0.0
  %127 = vmatpush1.msra.mxu0 0.0
  %128 = vmatprep.subr.mxu0 0.0
  %129 = vmatpush1.msra.mxu0 0.0
  %130 = vmatprep.subr.mxu0 0.0
  %131 = vmatpush1.msra.mxu0 0.0
  %132 = vmatprep.subr.mxu0 0.0
  %133 = vmatpush1.msra.mxu0 0.0
  %134 = vmatprep.subr.mxu0 0.0
  %135 = vmatpush1.msra.mxu0 0.0
  %136 = vmatprep.subr.mxu0 0.0
  %137 = vmatpush1.msra.mxu0 0.0
  %138 = vmatprep.mubr.f32.mxu0 0.0
  %139 = vmatmul.mubr.f32.gmra.mrb[0].mxu0 %v51
  %v140 = vpop.f32.mrb[0].mxu0
  %v141 = vadd.f32 %v47, %v140
  %v142 = vpop.f32.mrb[0].mxu0
  %143 = vmatprep.mubr.f32.mxu0 0.0
  %144 = vmatmul.mubr.f32.gmra.mrb[0].mxu0 %v54
  %v145 = vpop.f32.mrb[0].mxu0
  %v146 = vadd.f32 %v47, %v145
  %v147 = vpop.f32.mrb[0].mxu0
  %148 = vmatprep.mubr.f32.mxu0 0.0
  %149 = vmatmul.mubr.f32.gmra.mrb[0].mxu0 %v57
  %v150 = vpop.f32.mrb[0].mxu0
  %v151 = vadd.f32 %v47, %v150
  %v152 = vpop.f32.mrb[0].mxu0
  %153 = vmatprep.mubr.f32.mxu0 0.0
  %154 = vmatmul.mubr.f32.gmra.mrb[0].mxu0 %v60
  %v155 = vpop.f32.mrb[0].mxu0
  %v156 = vadd.f32 %v47, %v155
  %v157 = vpop.f32.mrb[0].mxu0
  %158 = vmatprep.mubr.f32.mxu0 0.0
  %159 = vmatmul.mubr.f32.gmra.mrb[0].mxu0 %v63
  %v160 = vpop.f32.mrb[0].mxu0
  %v161 = vadd.f32 %v47, %v160
  %v162 = vpop.f32.mrb[0].mxu0
  %163 = vmatprep.mubr.f32.mxu0 0.0
  %164 = vmatmul.mubr.f32.gmra.mrb[0].mxu0 %v66
  %v165 = vpop.f32.mrb[0].mxu0
  %v166 = vadd.f32 %v47, %v165
  %v167 = vpop.f32.mrb[0].mxu0
  %168 = vmatprep.mubr.f32.mxu0 0.0
  %169 = vmatmul.mubr.f32.gmra.mrb[0].mxu0 %v69
  %v170 = vpop.f32.mrb[0].mxu0
  %v171 = vadd.f32 %v47, %v170
  %v172 = vpop.f32.mrb[0].mxu0
  %173 = vmatprep.mubr.f32.mxu0 0.0
  %174 = vmatmul.mubr.f32.gmra.mrb[0].mxu0 %v72
  %v175 = vpop.f32.mrb[0].mxu0
  %v176 = vadd.f32 %v47, %v175
  %v177 = vpop.f32.mrb[0].mxu0
  %178 = vdwg.mxu0
  %179 = vst [vmem:[%s8] sm:$0xff] %v141
  %180 = vst [vmem:[%s8 + $0x8] sm:$0xff] %v146
  %181 = vst [vmem:[%s8 + $0x10] sm:$0xff] %v151
  %182 = vst [vmem:[%s8 + $0x18] sm:$0xff] %v156
  %183 = vst [vmem:[%s8 + $0x20] sm:$0xff] %v161
  %184 = vst [vmem:[%s8 + $0x28] sm:$0xff] %v166
  %185 = vst [vmem:[%s8 + $0x30] sm:$0xff] %v171
  %186 = vst [vmem:[%s8 + $0x38] sm:$0xff] %v176
  %v187 = vld [vmem:[%s4] sm:$0xff]
  %v188 = vld [vmem:[%s4 + $0x8] sm:$0xff]
  %v189 = vld [vmem:[%s4 + $0x10] sm:$0xff]
  %v190 = vld [vmem:[%s4 + $0x18] sm:$0xff]
  %v191 = vld [vmem:[%s4 + $0x20] sm:$0xff]
  %v192 = vld [vmem:[%s4 + $0x28] sm:$0xff]
  %v193 = vld [vmem:[%s4 + $0x30] sm:$0xff]
  %v194 = vld [vmem:[%s4 + $0x38] sm:$0xff]
  %v195 = vld [vmem:[%s4 + $0x40] sm:$0xff]
  %v196 = vld [vmem:[%s4 + $0x48] sm:$0xff]
  %v197 = vld [vmem:[%s4 + $0x50] sm:$0xff]
  %v198 = vld [vmem:[%s4 + $0x58] sm:$0xff]
  %v199 = vld [vmem:[%s4 + $0x60] sm:$0xff]
  %v200 = vld [vmem:[%s4 + $0x68] sm:$0xff]
  %v201 = vld [vmem:[%s4 + $0x70] sm:$0xff]
  %v202 = vld [vmem:[%s4 + $0x78] sm:$0xff]
  %s203 = sld [smem:[#allocation4]]
  %v204 = vstv %s203
  %v205 = vld [vmem:[#allocation2] sm:$0xff]
  %v206 = vld [vmem:[%s8] sm:$0xff]
  %207 = vmatprep.subr.mxu0 0.0
  %208 = vmatpush1.msra.mxu0 %v187
  %209 = vmatprep.subr.mxu0 0.0
  %210 = vmatpush1.msra.mxu0 %v188
  %211 = vmatprep.subr.mxu0 0.0
  %212 = vmatpush1.msra.mxu0 %v189
  %213 = vmatprep.subr.mxu0 0.0
  %214 = vmatpush1.msra.mxu0 %v190
  %215 = vmatprep.subr.mxu0 0.0
  %216 = vmatpush1.msra.mxu0 %v191
  %217 = vmatprep.subr.mxu0 0.0
  %218 = vmatpush1.msra.mxu0 %v192
  %219 = vmatprep.subr.mxu0 0.0
  %220 = vmatpush1.msra.mxu0 %v193
  %221 = vmatprep.subr.mxu0 0.0
  %222 = vmatpush1.msra.mxu0 %v194
  %223 = vmatprep.subr.mxu0 0.0
  %224 = vmatpush1.msra.mxu0 %v195
  %225 = vmatprep.subr.mxu0 0.0
  %226 = vmatpush1.msra.mxu0 %v196
  %227 = vmatprep.subr.mxu0 0.0
  %228 = vmatpush1.msra.mxu0 %v197
  %229 = vmatprep.subr.mxu0 0.0
  %230 = vmatpush1.msra.mxu0 %v198
  %231 = vmatprep.subr.mxu0 0.0
  %232 = vmatpush1.msra.mxu0 %v199
  %233 = vmatprep.subr.mxu0 0.0
  %234 = vmatpush1.msra.mxu0 %v200
  %235 = vmatprep.subr.mxu0 0.0
  %236 = vmatpush1.msra.mxu0 %v201
  %237 = vmatprep.subr.mxu0 0.0
  %238 = vmatpush1.msra.mxu0 %v202
  %239 = vmatprep.subr.mxu0 0.0
  %240 = vmatpush1.msra.mxu0 0.0
  %241 = vmatprep.subr.mxu0 0.0
  %242 = vmatpush1.msra.mxu0 0.0
  %243 = vmatprep.subr.mxu0 0.0
  %244 = vmatpush1.msra.mxu0 0.0
  %245 = vmatprep.subr.mxu0 0.0
  %246 = vmatpush1.msra.mxu0 0.0
  %247 = vmatprep.subr.mxu0 0.0
  %248 = vmatpush1.msra.mxu0 0.0
  %249 = vmatprep.subr.mxu0 0.0
  %250 = vmatpush1.msra.mxu0 0.0
  %251 = vmatprep.subr.mxu0 0.0
  %252 = vmatpush1.msra.mxu0 0.0
  %253 = vmatprep.subr.mxu0 0.0
  %254 = vmatpush1.msra.mxu0 0.0
  %255 = vmatprep.subr.mxu0 0.0
  %256 = vmatpush1.msra.mxu0 0.0
  %257 = vmatprep.subr.mxu0 0.0
  %258 = vmatpush1.msra.mxu0 0.0
  %259 = vmatprep.subr.mxu0 0.0
  %260 = vmatpush1.msra.mxu0 0.0
  %261 = vmatprep.subr.mxu0 0.0
  %262 = vmatpush1.msra.mxu0 0.0
  %263 = vmatprep.subr.mxu0 0.0
  %264 = vmatpush1.msra.mxu0 0.0
  %265 = vmatprep.subr.mxu0 0.0
  %266 = vmatpush1.msra.mxu0 0.0
  %267 = vmatprep.subr.mxu0 0.0
  %268 = vmatpush1.msra.mxu0 0.0
  %269 = vmatprep.subr.mxu0 0.0
  %270 = vmatpush1.msra.mxu0 0.0
  %271 = vmatprep.mubr.f32.mxu0 0.0
  %272 = vmatmul.mubr.f32.gmra.mrb[0].mxu0 %v205
  %v273 = vpop.f32.mrb[0].mxu0
  %v274 = vadd.f32 0.0, %v273
  %v275 = vpop.f32.mrb[0].mxu0
  %276 = vdwg.mxu0
  %v277 = vadd.f32 %v206, %v274
  %v278 = vtanh.pop %v277
  %v279 = vsub.f32 %v278, %v205
  %v280 = vmul.f32 %v204, %v279
  %v281 = vadd.f32 %v205, %v280
  %282 = vst [vmem:[%s8] sm:$0xff] %v281
  %s283 = scalar_lea.vmem %s8, 8
  %v284 = vld [vmem:[%s283] sm:$0xff]
  %285 = vmatprep.subr.mxu0 0.0
  %286 = vmatpush1.msra.mxu0 %v187
  %287 = vmatprep.subr.mxu0 0.0
  %288 = vmatpush1.msra.mxu0 %v188
  %289 = vmatprep.subr.mxu0 0.0
  %290 = vmatpush1.msra.mxu0 %v189
  %291 = vmatprep.subr.mxu0 0.0
  %292 = vmatpush1.msra.mxu0 %v190
  %293 = vmatprep.subr.mxu0 0.0
  %294 = vmatpush1.msra.mxu0 %v191
  %295 = vmatprep.subr.mxu0 0.0
  %296 = vmatpush1.msra.mxu0 %v192
  %297 = vmatprep.subr.mxu0 0.0
  %298 = vmatpush1.msra.mxu0 %v193
  %299 = vmatprep.subr.mxu0 0.0
  %300 = vmatpush1.msra.mxu0 %v194
  %301 = vmatprep.subr.mxu0 0.0
  %302 = vmatpush1.msra.mxu0 %v195
  %303 = vmatprep.subr.mxu0 0.0
  %304 = vmatpush1.msra.mxu0 %v196
  %305 = vmatprep.subr.mxu0 0.0
  %306 = vmatpush1.msra.mxu0 %v197
  %307 = vmatprep.subr.mxu0 0.0
  %308 = vmatpush1.msra.mxu0 %v198
  %309 = vmatprep.subr.mxu0 0.0
  %310 = vmatpush1.msra.mxu0 %v199
  %311 = vmatprep.subr.mxu0 0.0
  %312 = vmatpush1.msra.mxu0 %v200
  %313 = vmatprep.subr.mxu0 0.0
  %314 = vmatpush1.msra.mxu0 %v201
  %315 = vmatprep.subr.mxu0 0.0
  %316 = vmatpush1.msra.mxu0 %v202
  %317 = vmatprep.subr.mxu0 0.0
  %318 = vmatpush1.msra.mxu0 0.0
  %319 = vmatprep.subr.mxu0 0.0
  %320 = vmatpush1.msra.mxu0 0.0
  %321 = vmatprep.subr.mxu0 0.0
  %322 = vmatpush1.msra.mxu0 0.0
  %323 = vmatprep.subr.mxu0 0.0
  %324 = vmatpush1.msra.mxu0 0.0
  %325 = vmatprep.subr.mxu0 0.0
  %326 = vmatpush1.msra.mxu0 0.0
  %327 = vmatprep.subr.mxu0 0.0
  %328 = vmatpush1.msra.mxu0 0.0
  %329 = vmatprep.subr.mxu0 0.0
  %330 = vmatpush1.msra.mxu0 0.0
  %331 = vmatprep.subr.mxu0 0.0
  %332 = vmatpush1.msra.mxu0 0.0
  %333 = vmatprep.subr.mxu0 0.0
  %334 = vmatpush1.msra.mxu0 0.0
  %335 = vmatprep.subr.mxu0 0.0
  %336 = vmatpush1.msra.mxu0 0.0
  %337 = vmatprep.subr.mxu0 0.0
  %338 = vmatpush1.msra.mxu0 0.0
  %339 = vmatprep.subr.mxu0 0.0
  %340 = vmatpush1.msra.mxu0 0.0
  %341 = vmatprep.subr.mxu0 0.0
  %342 = vmatpush1.msra.mxu0 0.0
  %343 = vmatprep.subr.mxu0 0.0
  %344 = vmatpush1.msra.mxu0 0.0
  %345 = vmatprep.subr.mxu0 0.0
  %346 = vmatpush1.msra.mxu0 0.0
  %347 = vmatprep.subr.mxu0 0.0
  %348 = vmatpush1.msra.mxu0 0.0
  %349 = vmatprep.mubr.f32.mxu0 0.0
  %350 = vmatmul.mubr.f32.gmra.mrb[0].mxu0 %v281
  %v351 = vpop.f32.mrb[0].mxu0
  %v352 = vadd.f32 0.0, %v351
  %v353 = vpop.f32.mrb[0].mxu0
  %354 = vdwg.mxu0
  %v355 = vadd.f32 %v284, %v352
  %v356 = vtanh.pop %v355
  %v357 = vsub.f32 %v356, %v281
  %v358 = vmul.f32 %v204, %v357
  %v359 = vadd.f32 %v281, %v358
  %360 = vst [vmem:[%s283] sm:$0xff] %v359
  %s361 = scalar_lea.vmem %s8, 16
  %v362 = vld [vmem:[%s361] sm:$0xff]
  %363 = vmatprep.subr.mxu0 0.0
  %364 = vmatpush1.msra.mxu0 %v187
  %365 = vmatprep.subr.mxu0 0.0
  %366 = vmatpush1.msra.mxu0 %v188
  %367 = vmatprep.subr.mxu0 0.0
  %368 = vmatpush1.msra.mxu0 %v189
  %369 = vmatprep.subr.mxu0 0.0
  %370 = vmatpush1.msra.mxu0 %v190
  %371 = vmatprep.subr.mxu0 0.0
  %372 = vmatpush1.msra.mxu0 %v191
  %373 = vmatprep.subr.mxu0 0.0
  %374 = vmatpush1.msra.mxu0 %v192
  %375 = vmatprep.subr.mxu0 0.0
  %376 = vmatpush1.msra.mxu0 %v193
  %377 = vmatprep.subr.mxu0 0.0
  %378 = vmatpush1.msra.mxu0 %v194
  %379 = vmatprep.subr.mxu0 0.0
  %380 = vmatpush1.msra.mxu0 %v195
  %381 = vmatprep.subr.mxu0 0.0
  %382 = vmatpush1.msra.mxu0 %v196
  %383 = vmatprep.subr.mxu0 0.0
  %384 = vmatpush1.msra.mxu0 %v197
  %385 = vmatprep.subr.mxu0 0.0
  %386 = vmatpush1.msra.mxu0 %v198
  %387 = vmatprep.subr.mxu0 0.0
  %388 = vmatpush1.msra.mxu0 %v199
  %389 = vmatprep.subr.mxu0 0.0
  %390 = vmatpush1.msra.mxu0 %v200
  %391 = vmatprep.subr.mxu0 0.0
  %392 = vmatpush1.msra.mxu0 %v201
  %393 = vmatprep.subr.mxu0 0.0
  %394 = vmatpush1.msra.mxu0 %v202
  %395 = vmatprep.subr.mxu0 0.0
  %396 = vmatpush1.msra.mxu0 0.0
  %397 = vmatprep.subr.mxu0 0.0
  %398 = vmatpush1.msra.mxu0 0.0
  %399 = vmatprep.subr.mxu0 0.0
  %400 = vmatpush1.msra.mxu0 0.0
  %401 = vmatprep.subr.mxu0 0.0
  %402 = vmatpush1.msra.mxu0 0.0
  %403 = vmatprep.subr.mxu0 0.0
  %404 = vmatpush1.msra.mxu0 0.0
  %405 = vmatprep.subr.mxu0 0.0
  %406 = vmatpush1.msra.mxu0 0.0
  %407 = vmatprep.subr.mxu0 0.0
  %408 = vmatpush1.msra.mxu0 0.0
  %409 = vmatprep.subr.mxu0 0.0
  %410 = vmatpush1.msra.mxu0 0.0
  %411 = vmatprep.subr.mxu0 0.0
  %412 = vmatpush1.msra.mxu0 0.0
  %413 = vmatprep.subr.mxu0 0.0
  %414 = vmatpush1.msra.mxu0 0.0
  %415 = vmatprep.subr.mxu0 0.0
  %416 = vmatpush1.msra.mxu0 0.0
  %417 = vmatprep.subr.mxu0 0.0
  %418 = vmatpush1.msra.mxu0 0.0
  %419 = vmatprep.subr.mxu0 0.0
  %420 = vmatpush1.msra.mxu0 0.0
  %421 = vmatprep.subr.mxu0 0.0
  %422 = vmatpush1.msra.mxu0 0.0
  %423 = vmatprep.subr.mxu0 0.0
  %424 = vmatpush1.msra.mxu0 0.0
  %425 = vmatprep.subr.mxu0 0.0
  %426 = vmatpush1.msra.mxu0 0.0
  %427 = vmatprep.mubr.f32.mxu0 0.0
  %428 = vmatmul.mubr.f32.gmra.mrb[0].mxu0 %v359
  %v429 = vpop.f32.mrb[0].mxu0
  %v430 = vadd.f32 0.0, %v429
  %v431 = vpop.f32.mrb[0].mxu0
  %432 = vdwg.mxu0
  %v433 = vadd.f32 %v362, %v430
  %v434 = vtanh.pop %v433
  %v435 = vsub.f32 %v434, %v359
  %v436 = vmul.f32 %v204, %v435
  %v437 = vadd.f32 %v359, %v436
  %438 = vst [vmem:[%s361] sm:$0xff] %v437
  %s439 = scalar_lea.vmem %s8, 24
  %v440 = vld [vmem:[%s439] sm:$0xff]
  %441 = vmatprep.subr.mxu0 0.0
  %442 = vmatpush1.msra.mxu0 %v187
  %443 = vmatprep.subr.mxu0 0.0
  %444 = vmatpush1.msra.mxu0 %v188
  %445 = vmatprep.subr.mxu0 0.0
  %446 = vmatpush1.msra.mxu0 %v189
  %447 = vmatprep.subr.mxu0 0.0
  %448 = vmatpush1.msra.mxu0 %v190
  %449 = vmatprep.subr.mxu0 0.0
  %450 = vmatpush1.msra.mxu0 %v191
  %451 = vmatprep.subr.mxu0 0.0
  %452 = vmatpush1.msra.mxu0 %v192
  %453 = vmatprep.subr.mxu0 0.0
  %454 = vmatpush1.msra.mxu0 %v193
  %455 = vmatprep.subr.mxu0 0.0
  %456 = vmatpush1.msra.mxu0 %v194
  %457 = vmatprep.subr.mxu0 0.0
  %458 = vmatpush1.msra.mxu0 %v195
  %459 = vmatprep.subr.mxu0 0.0
  %460 = vmatpush1.msra.mxu0 %v196
  %461 = vmatprep.subr.mxu0 0.0
  %462 = vmatpush1.msra.mxu0 %v197
  %463 = vmatprep.subr.mxu0 0.0
  %464 = vmatpush1.msra.mxu0 %v198
  %465 = vmatprep.subr.mxu0 0.0
  %466 = vmatpush1.msra.mxu0 %v199
  %467 = vmatprep.subr.mxu0 0.0
  %468 = vmatpush1.msra.mxu0 %v200
  %469 = vmatprep.subr.mxu0 0.0
  %470 = vmatpush1.msra.mxu0 %v201
  %471 = vmatprep.subr.mxu0 0.0
  %472 = vmatpush1.msra.mxu0 %v202
  %473 = vmatprep.subr.mxu0 0.0
  %474 = vmatpush1.msra.mxu0 0.0
  %475 = vmatprep.subr.mxu0 0.0
  %476 = vmatpush1.msra.mxu0 0.0
  %477 = vmatprep.subr.mxu0 0.0
  %478 = vmatpush1.msra.mxu0 0.0
  %479 = vmatprep.subr.mxu0 0.0
  %480 = vmatpush1.msra.mxu0 0.0
  %481 = vmatprep.subr.mxu0 0.0
  %482 = vmatpush1.msra.mxu0 0.0
  %483 = vmatprep.subr.mxu0 0.0
  %484 = vmatpush1.msra.mxu0 0.0
  %485 = vmatprep.subr.mxu0 0.0
  %486 = vmatpush1.msra.mxu0 0.0
  %487 = vmatprep.subr.mxu0 0.0
  %488 = vmatpush1.msra.mxu0 0.0
  %489 = vmatprep.subr.mxu0 0.0
  %490 = vmatpush1.msra.mxu0 0.0
  %491 = vmatprep.subr.mxu0 0.0
  %492 = vmatpush1.msra.mxu0 0.0
  %493 = vmatprep.subr.mxu0 0.0
  %494 = vmatpush1.msra.mxu0 0.0
  %495 = vmatprep.subr.mxu0 0.0
  %496 = vmatpush1.msra.mxu0 0.0
  %497 = vmatprep.subr.mxu0 0.0
  %498 = vmatpush1.msra.mxu0 0.0
  %499 = vmatprep.subr.mxu0 0.0
  %500 = vmatpush1.msra.mxu0 0.0
  %501 = vmatprep.subr.mxu0 0.0
  %502 = vmatpush1.msra.mxu0 0.0
  %503 = vmatprep.subr.mxu0 0.0
  %504 = vmatpush1.msra.mxu0 0.0
  %505 = vmatprep.mubr.f32.mxu0 0.0
  %506 = vmatmul.mubr.f32.gmra.mrb[0].mxu0 %v437
  %v507 = vpop.f32.mrb[0].mxu0
  %v508 = vadd.f32 0.0, %v507
  %v509 = vpop.f32.mrb[0].mxu0
  %510 = vdwg.mxu0
  %v511 = vadd.f32 %v440, %v508
  %v512 = vtanh.pop %v511
  %v513 = vsub.f32 %v512, %v437
  %v514 = vmul.f32 %v204, %v513
  %v515 = vadd.f32 %v437, %v514
  %516 = vst [vmem:[%s439] sm:$0xff] %v515
  %s517 = scalar_lea.vmem %s8, 32
  %v518 = vld [vmem:[%s517] sm:$0xff]
  %519 = vmatprep.subr.mxu0 0.0
  %520 = vmatpush1.msra.mxu0 %v187
  %521 = vmatprep.subr.mxu0 0.0
  %522 = vmatpush1.msra.mxu0 %v188
  %523 = vmatprep.subr.mxu0 0.0
  %524 = vmatpush1.msra.mxu0 %v189
  %525 = vmatprep.subr.mxu0 0.0
  %526 = vmatpush1.msra.mxu0 %v190
  %527 = vmatprep.subr.mxu0 0.0
  %528 = vmatpush1.msra.mxu0 %v191
  %529 = vmatprep.subr.mxu0 0.0
  %530 = vmatpush1.msra.mxu0 %v192
  %531 = vmatprep.subr.mxu0 0.0
  %532 = vmatpush1.msra.mxu0 %v193
  %533 = vmatprep.subr.mxu0 0.0
  %534 = vmatpush1.msra.mxu0 %v194
  %535 = vmatprep.subr.mxu0 0.0
  %536 = vmatpush1.msra.mxu0 %v195
  %537 = vmatprep.subr.mxu0 0.0
  %538 = vmatpush1.msra.mxu0 %v196
  %539 = vmatprep.subr.mxu0 0.0
  %540 = vmatpush1.msra.mxu0 %v197
  %541 = vmatprep.subr.mxu0 0.0
  %542 = vmatpush1.msra.mxu0 %v198
  %543 = vmatprep.subr.mxu0 0.0
  %544 = vmatpush1.msra.mxu0 %v199
  %545 = vmatprep.subr.mxu0 0.0
  %546 = vmatpush1.msra.mxu0 %v200
  %547 = vmatprep.subr.mxu0 0.0
  %548 = vmatpush1.msra.mxu0 %v201
  %549 = vmatprep.subr.mxu0 0.0
  %550 = vmatpush1.msra.mxu0 %v202
  %551 = vmatprep.subr.mxu0 0.0
  %552 = vmatpush1.msra.mxu0 0.0
  %553 = vmatprep.subr.mxu0 0.0
  %554 = vmatpush1.msra.mxu0 0.0
  %555 = vmatprep.subr.mxu0 0.0
  %556 = vmatpush1.msra.mxu0 0.0
  %557 = vmatprep.subr.mxu0 0.0
  %558 = vmatpush1.msra.mxu0 0.0
  %559 = vmatprep.subr.mxu0 0.0
  %560 = vmatpush1.msra.mxu0 0.0
  %561 = vmatprep.subr.mxu0 0.0
  %562 = vmatpush1.msra.mxu0 0.0
  %563 = vmatprep.subr.mxu0 0.0
  %564 = vmatpush1.msra.mxu0 0.0
  %565 = vmatprep.subr.mxu0 0.0
  %566 = vmatpush1.msra.mxu0 0.0
  %567 = vmatprep.subr.mxu0 0.0
  %568 = vmatpush1.msra.mxu0 0.0
  %569 = vmatprep.subr.mxu0 0.0
  %570 = vmatpush1.msra.mxu0 0.0
  %571 = vmatprep.subr.mxu0 0.0
  %572 = vmatpush1.msra.mxu0 0.0
  %573 = vmatprep.subr.mxu0 0.0
  %574 = vmatpush1.msra.mxu0 0.0
  %575 = vmatprep.subr.mxu0 0.0
  %576 = vmatpush1.msra.mxu0 0.0
  %577 = vmatprep.subr.mxu0 0.0
  %578 = vmatpush1.msra.mxu0 0.0
  %579 = vmatprep.subr.mxu0 0.0
  %580 = vmatpush1.msra.mxu0 0.0
  %581 = vmatprep.subr.mxu0 0.0
  %582 = vmatpush1.msra.mxu0 0.0
  %583 = vmatprep.mubr.f32.mxu0 0.0
  %584 = vmatmul.mubr.f32.gmra.mrb[0].mxu0 %v515
  %v585 = vpop.f32.mrb[0].mxu0
  %v586 = vadd.f32 0.0, %v585
  %v587 = vpop.f32.mrb[0].mxu0
  %588 = vdwg.mxu0
  %v589 = vadd.f32 %v518, %v586
  %v590 = vtanh.pop %v589
  %v591 = vsub.f32 %v590, %v515
  %v592 = vmul.f32 %v204, %v591
  %v593 = vadd.f32 %v515, %v592
  %594 = vst [vmem:[%s517] sm:$0xff] %v593
  %s595 = scalar_lea.vmem %s8, 40
  %v596 = vld [vmem:[%s595] sm:$0xff]
  %597 = vmatprep.subr.mxu0 0.0
  %598 = vmatpush1.msra.mxu0 %v187
  %599 = vmatprep.subr.mxu0 0.0
  %600 = vmatpush1.msra.mxu0 %v188
  %601 = vmatprep.subr.mxu0 0.0
  %602 = vmatpush1.msra.mxu0 %v189
  %603 = vmatprep.subr.mxu0 0.0
  %604 = vmatpush1.msra.mxu0 %v190
  %605 = vmatprep.subr.mxu0 0.0
  %606 = vmatpush1.msra.mxu0 %v191
  %607 = vmatprep.subr.mxu0 0.0
  %608 = vmatpush1.msra.mxu0 %v192
  %609 = vmatprep.subr.mxu0 0.0
  %610 = vmatpush1.msra.mxu0 %v193
  %611 = vmatprep.subr.mxu0 0.0
  %612 = vmatpush1.msra.mxu0 %v194
  %613 = vmatprep.subr.mxu0 0.0
  %614 = vmatpush1.msra.mxu0 %v195
  %615 = vmatprep.subr.mxu0 0.0
  %616 = vmatpush1.msra.mxu0 %v196
  %617 = vmatprep.subr.mxu0 0.0
  %618 = vmatpush1.msra.mxu0 %v197
  %619 = vmatprep.subr.mxu0 0.0
  %620 = vmatpush1.msra.mxu0 %v198
  %621 = vmatprep.subr.mxu0 0.0
  %622 = vmatpush1.msra.mxu0 %v199
  %623 = vmatprep.subr.mxu0 0.0
  %624 = vmatpush1.msra.mxu0 %v200
  %625 = vmatprep.subr.mxu0 0.0
  %626 = vmatpush1.msra.mxu0 %v201
  %627 = vmatprep.subr.mxu0 0.0
  %628 = vmatpush1.msra.mxu0 %v202
  %629 = vmatprep.subr.mxu0 0.0
  %630 = vmatpush1.msra.mxu0 0.0
  %631 = vmatprep.subr.mxu0 0.0
  %632 = vmatpush1.msra.mxu0 0.0
  %633 = vmatprep.subr.mxu0 0.0
  %634 = vmatpush1.msra.mxu0 0.0
  %635 = vmatprep.subr.mxu0 0.0
  %636 = vmatpush1.msra.mxu0 0.0
  %637 = vmatprep.subr.mxu0 0.0
  %638 = vmatpush1.msra.mxu0 0.0
  %639 = vmatprep.subr.mxu0 0.0
  %640 = vmatpush1.msra.mxu0 0.0
  %641 = vmatprep.subr.mxu0 0.0
  %642 = vmatpush1.msra.mxu0 0.0
  %643 = vmatprep.subr.mxu0 0.0
  %644 = vmatpush1.msra.mxu0 0.0
  %645 = vmatprep.subr.mxu0 0.0
  %646 = vmatpush1.msra.mxu0 0.0
  %647 = vmatprep.subr.mxu0 0.0
  %648 = vmatpush1.msra.mxu0 0.0
  %649 = vmatprep.subr.mxu0 0.0
  %650 = vmatpush1.msra.mxu0 0.0
  %651 = vmatprep.subr.mxu0 0.0
  %652 = vmatpush1.msra.mxu0 0.0
  %653 = vmatprep.subr.mxu0 0.0
  %654 = vmatpush1.msra.mxu0 0.0
  %655 = vmatprep.subr.mxu0 0.0
  %656 = vmatpush1.msra.mxu0 0.0
  %657 = vmatprep.subr.mxu0 0.0
  %658 = vmatpush1.msra.mxu0 0.0
  %659 = vmatprep.subr.mxu0 0.0
  %660 = vmatpush1.msra.mxu0 0.0
  %661 = vmatprep.mubr.f32.mxu0 0.0
  %662 = vmatmul.mubr.f32.gmra.mrb[0].mxu0 %v593
  %v663 = vpop.f32.mrb[0].mxu0
  %v664 = vadd.f32 0.0, %v663
  %v665 = vpop.f32.mrb[0].mxu0
  %666 = vdwg.mxu0
  %v667 = vadd.f32 %v596, %v664
  %v668 = vtanh.pop %v667
  %v669 = vsub.f32 %v668, %v593
  %v670 = vmul.f32 %v204, %v669
  %v671 = vadd.f32 %v593, %v670
  %672 = vst [vmem:[%s595] sm:$0xff] %v671
  %s673 = scalar_lea.vmem %s8, 48
  %v674 = vld [vmem:[%s673] sm:$0xff]
  %675 = vmatprep.subr.mxu0 0.0
  %676 = vmatpush1.msra.mxu0 %v187
  %677 = vmatprep.subr.mxu0 0.0
  %678 = vmatpush1.msra.mxu0 %v188
  %679 = vmatprep.subr.mxu0 0.0
  %680 = vmatpush1.msra.mxu0 %v189
  %681 = vmatprep.subr.mxu0 0.0
  %682 = vmatpush1.msra.mxu0 %v190
  %683 = vmatprep.subr.mxu0 0.0
  %684 = vmatpush1.msra.mxu0 %v191
  %685 = vmatprep.subr.mxu0 0.0
  %686 = vmatpush1.msra.mxu0 %v192
  %687 = vmatprep.subr.mxu0 0.0
  %688 = vmatpush1.msra.mxu0 %v193
  %689 = vmatprep.subr.mxu0 0.0
  %690 = vmatpush1.msra.mxu0 %v194
  %691 = vmatprep.subr.mxu0 0.0
  %692 = vmatpush1.msra.mxu0 %v195
  %693 = vmatprep.subr.mxu0 0.0
  %694 = vmatpush1.msra.mxu0 %v196
  %695 = vmatprep.subr.mxu0 0.0
  %696 = vmatpush1.msra.mxu0 %v197
  %697 = vmatprep.subr.mxu0 0.0
  %698 = vmatpush1.msra.mxu0 %v198
  %699 = vmatprep.subr.mxu0 0.0
  %700 = vmatpush1.msra.mxu0 %v199
  %701 = vmatprep.subr.mxu0 0.0
  %702 = vmatpush1.msra.mxu0 %v200
  %703 = vmatprep.subr.mxu0 0.0
  %704 = vmatpush1.msra.mxu0 %v201
  %705 = vmatprep.subr.mxu0 0.0
  %706 = vmatpush1.msra.mxu0 %v202
  %707 = vmatprep.subr.mxu0 0.0
  %708 = vmatpush1.msra.mxu0 0.0
  %709 = vmatprep.subr.mxu0 0.0
  %710 = vmatpush1.msra.mxu0 0.0
  %711 = vmatprep.subr.mxu0 0.0
  %712 = vmatpush1.msra.mxu0 0.0
  %713 = vmatprep.subr.mxu0 0.0
  %714 = vmatpush1.msra.mxu0 0.0
  %715 = vmatprep.subr.mxu0 0.0
  %716 = vmatpush1.msra.mxu0 0.0
  %717 = vmatprep.subr.mxu0 0.0
  %718 = vmatpush1.msra.mxu0 0.0
  %719 = vmatprep.subr.mxu0 0.0
  %720 = vmatpush1.msra.mxu0 0.0
  %721 = vmatprep.subr.mxu0 0.0
  %722 = vmatpush1.msra.mxu0 0.0
  %723 = vmatprep.subr.mxu0 0.0
  %724 = vmatpush1.msra.mxu0 0.0
  %725 = vmatprep.subr.mxu0 0.0
  %726 = vmatpush1.msra.mxu0 0.0
  %727 = vmatprep.subr.mxu0 0.0
  %728 = vmatpush1.msra.mxu0 0.0
  %729 = vmatprep.subr.mxu0 0.0
  %730 = vmatpush1.msra.mxu0 0.0
  %731 = vmatprep.subr.mxu0 0.0
  %732 = vmatpush1.msra.mxu0 0.0
  %733 = vmatprep.subr.mxu0 0.0
  %734 = vmatpush1.msra.mxu0 0.0
  %735 = vmatprep.subr.mxu0 0.0
  %736 = vmatpush1.msra.mxu0 0.0
  %737 = vmatprep.subr.mxu0 0.0
  %738 = vmatpush1.msra.mxu0 0.0
  %739 = vmatprep.mubr.f32.mxu0 0.0
  %740 = vmatmul.mubr.f32.gmra.mrb[0].mxu0 %v671
  %v741 = vpop.f32.mrb[0].mxu0
  %v742 = vadd.f32 0.0, %v741
  %v743 = vpop.f32.mrb[0].mxu0
  %744 = vdwg.mxu0
  %v745 = vadd.f32 %v674, %v742
  %v746 = vtanh.pop %v745
  %v747 = vsub.f32 %v746, %v671
  %v748 = vmul.f32 %v204, %v747
  %v749 = vadd.f32 %v671, %v748
  %750 = vst [vmem:[%s673] sm:$0xff] %v749
  %s751 = scalar_lea.vmem %s8, 56
  %v752 = vld [vmem:[%s751] sm:$0xff]
  %753 = vmatprep.subr.mxu0 0.0
  %754 = vmatpush1.msra.mxu0 %v187
  %755 = vmatprep.subr.mxu0 0.0
  %756 = vmatpush1.msra.mxu0 %v188
  %757 = vmatprep.subr.mxu0 0.0
  %758 = vmatpush1.msra.mxu0 %v189
  %759 = vmatprep.subr.mxu0 0.0
  %760 = vmatpush1.msra.mxu0 %v190
  %761 = vmatprep.subr.mxu0 0.0
  %762 = vmatpush1.msra.mxu0 %v191
  %763 = vmatprep.subr.mxu0 0.0
  %764 = vmatpush1.msra.mxu0 %v192
  %765 = vmatprep.subr.mxu0 0.0
  %766 = vmatpush1.msra.mxu0 %v193
  %767 = vmatprep.subr.mxu0 0.0
  %768 = vmatpush1.msra.mxu0 %v194
  %769 = vmatprep.subr.mxu0 0.0
  %770 = vmatpush1.msra.mxu0 %v195
  %771 = vmatprep.subr.mxu0 0.0
  %772 = vmatpush1.msra.mxu0 %v196
  %773 = vmatprep.subr.mxu0 0.0
  %774 = vmatpush1.msra.mxu0 %v197
  %775 = vmatprep.subr.mxu0 0.0
  %776 = vmatpush1.msra.mxu0 %v198
  %777 = vmatprep.subr.mxu0 0.0
  %778 = vmatpush1.msra.mxu0 %v199
  %779 = vmatprep.subr.mxu0 0.0
  %780 = vmatpush1.msra.mxu0 %v200
  %781 = vmatprep.subr.mxu0 0.0
  %782 = vmatpush1.msra.mxu0 %v201
  %783 = vmatprep.subr.mxu0 0.0
  %784 = vmatpush1.msra.mxu0 %v202
  %785 = vmatprep.subr.mxu0 0.0
  %786 = vmatpush1.msra.mxu0 0.0
  %787 = vmatprep.subr.mxu0 0.0
  %788 = vmatpush1.msra.mxu0 0.0
  %789 = vmatprep.subr.mxu0 0.0
  %790 = vmatpush1.msra.mxu0 0.0
  %791 = vmatprep.subr.mxu0 0.0
  %792 = vmatpush1.msra.mxu0 0.0
  %793 = vmatprep.subr.mxu0 0.0
  %794 = vmatpush1.msra.mxu0 0.0
  %795 = vmatprep.subr.mxu0 0.0
  %796 = vmatpush1.msra.mxu0 0.0
  %797 = vmatprep.subr.mxu0 0.0
  %798 = vmatpush1.msra.mxu0 0.0
  %799 = vmatprep.subr.mxu0 0.0
  %800 = vmatpush1.msra.mxu0 0.0
  %801 = vmatprep.subr.mxu0 0.0
  %802 = vmatpush1.msra.mxu0 0.0
  %803 = vmatprep.subr.mxu0 0.0
  %804 = vmatpush1.msra.mxu0 0.0
  %805 = vmatprep.subr.mxu0 0.0
  %806 = vmatpush1.msra.mxu0 0.0
  %807 = vmatprep.subr.mxu0 0.0
  %808 = vmatpush1.msra.mxu0 0.0
  %809 = vmatprep.subr.mxu0 0.0
  %810 = vmatpush1.msra.mxu0 0.0
  %811 = vmatprep.subr.mxu0 0.0
  %812 = vmatpush1.msra.mxu0 0.0
  %813 = vmatprep.subr.mxu0 0.0
  %814 = vmatpush1.msra.mxu0 0.0
  %815 = vmatprep.subr.mxu0 0.0
  %816 = vmatpush1.msra.mxu0 0.0
  %817 = vmatprep.mubr.f32.mxu0 0.0
  %818 = vmatmul.mubr.f32.gmra.mrb[0].mxu0 %v749
  %v819 = vpop.f32.mrb[0].mxu0
  %v820 = vadd.f32 0.0, %v819
  %v821 = vpop.f32.mrb[0].mxu0
  %822 = vdwg.mxu0
  %v823 = vadd.f32 %v752, %v820
  %v824 = vtanh.pop %v823
  %v825 = vsub.f32 %v824, %v749
  %v826 = vmul.f32 %v204, %v825
  %v827 = vadd.f32 %v749, %v826
  %828 = vst [vmem:[%s751] sm:$0xff] %v827
  %829 = vst [vmem:[#allocation2] sm:$0xff] %v827
  %v830 = vld [vmem:[%s8] sm:$0xff]
  %v831 = vld [vmem:[%s8 + $0x8] sm:$0xff]
  %v832 = vld [vmem:[%s8 + $0x10] sm:$0xff]
  %v833 = vld [vmem:[%s8 + $0x18] sm:$0xff]
  %v834 = vld [vmem:[%s8 + $0x20] sm:$0xff]
  %v835 = vld [vmem:[%s8 + $0x28] sm:$0xff]
  %v836 = vld [vmem:[%s8 + $0x30] sm:$0xff]
  %v837 = vld [vmem:[%s8 + $0x38] sm:$0xff]
  %v838 = vld [vmem:[%s5] sm:$0xff]
  %v839 = vld [vmem:[%s5 + $0x8] sm:$0xff]
  %v840 = vld [vmem:[%s5 + $0x10] sm:$0xff]
  %v841 = vld [vmem:[%s5 + $0x18] sm:$0xff]
  %v842 = vld [vmem:[%s5 + $0x20] sm:$0xff]
  %v843 = vld [vmem:[%s5 + $0x28] sm:$0xff]
  %v844 = vld [vmem:[%s5 + $0x30] sm:$0xff]
  %v845 = vld [vmem:[%s5 + $0x38] sm:$0xff]
  %v846 = vld [vmem:[%s5 + $0x40] sm:$0xff]
  %v847 = vld [vmem:[%s5 + $0x48] sm:$0xff]
  %v848 = vld [vmem:[%s5 + $0x50] sm:$0xff]
  %v849 = vld [vmem:[%s5 + $0x58] sm:$0xff]
  %v850 = vld [vmem:[%s5 + $0x60] sm:$0xff]
  %v851 = vld [vmem:[%s5 + $0x68] sm:$0xff]
  %v852 = vld [vmem:[%s5 + $0x70] sm:$0xff]
  %v853 = vld [vmem:[%s5 + $0x78] sm:$0xff]
  %v854 = vld [vmem:[%s6] sm:$0x1]
  %v856 = vlaneseq
  %v857 = vshrl.u32 %v856, 7
  %v858 = vsub.s32 0, %v857
  %v859 = vrot.slane %v854, %v858
  %861 = vmatprep.subr.mxu0 0.0
  %862 = vmatpush1.msra.mxu0 %v838
  %863 = vmatprep.subr.mxu0 0.0
  %864 = vmatpush1.msra.mxu0 %v839
  %865 = vmatprep.subr.mxu0 0.0
  %866 = vmatpush1.msra.mxu0 %v840
  %867 = vmatprep.subr.mxu0 0.0
  %868 = vmatpush1.msra.mxu0 %v841
  %869 = vmatprep.subr.mxu0 0.0
  %870 = vmatpush1.msra.mxu0 %v842
  %871 = vmatprep.subr.mxu0 0.0
  %872 = vmatpush1.msra.mxu0 %v843
  %873 = vmatprep.subr.mxu0 0.0
  %874 = vmatpush1.msra.mxu0 %v844
  %875 = vmatprep.subr.mxu0 0.0
  %876 = vmatpush1.msra.mxu0 %v845
  %877 = vmatprep.subr.mxu0 0.0
  %878 = vmatpush1.msra.mxu0 %v846
  %879 = vmatprep.subr.mxu0 0.0
  %880 = vmatpush1.msra.mxu0 %v847
  %881 = vmatprep.subr.mxu0 0.0
  %882 = vmatpush1.msra.mxu0 %v848
  %883 = vmatprep.subr.mxu0 0.0
  %884 = vmatpush1.msra.mxu0 %v849
  %885 = vmatprep.subr.mxu0 0.0
  %886 = vmatpush1.msra.mxu0 %v850
  %887 = vmatprep.subr.mxu0 0.0
  %888 = vmatpush1.msra.mxu0 %v851
  %889 = vmatprep.subr.mxu0 0.0
  %890 = vmatpush1.msra.mxu0 %v852
  %891 = vmatprep.subr.mxu0 0.0
  %892 = vmatpush1.msra.mxu0 %v853
  %893 = vmatprep.subr.mxu0 0.0
  %894 = vmatpush1.msra.mxu0 0.0
  %895 = vmatprep.subr.mxu0 0.0
  %896 = vmatpush1.msra.mxu0 0.0
  %897 = vmatprep.subr.mxu0 0.0
  %898 = vmatpush1.msra.mxu0 0.0
  %899 = vmatprep.subr.mxu0 0.0
  %900 = vmatpush1.msra.mxu0 0.0
  %901 = vmatprep.subr.mxu0 0.0
  %902 = vmatpush1.msra.mxu0 0.0
  %903 = vmatprep.subr.mxu0 0.0
  %904 = vmatpush1.msra.mxu0 0.0
  %905 = vmatprep.subr.mxu0 0.0
  %906 = vmatpush1.msra.mxu0 0.0
  %907 = vmatprep.subr.mxu0 0.0
  %908 = vmatpush1.msra.mxu0 0.0
  %909 = vmatprep.subr.mxu0 0.0
  %910 = vmatpush1.msra.mxu0 0.0
  %911 = vmatprep.subr.mxu0 0.0
  %912 = vmatpush1.msra.mxu0 0.0
  %913 = vmatprep.subr.mxu0 0.0
  %914 = vmatpush1.msra.mxu0 0.0
  %915 = vmatprep.subr.mxu0 0.0
  %916 = vmatpush1.msra.mxu0 0.0
  %917 = vmatprep.subr.mxu0 0.0
  %918 = vmatpush1.msra.mxu0 0.0
  %919 = vmatprep.subr.mxu0 0.0
  %920 = vmatpush1.msra.mxu0 0.0
  %921 = vmatprep.subr.mxu0 0.0
  %922 = vmatpush1.msra.mxu0 0.0
  %923 = vmatprep.subr.mxu0 0.0
  %924 = vmatpush1.msra.mxu0 0.0
  %925 = vmatprep.mubr.f32.mxu0 0.0
  %926 = vmatmul.mubr.f32.gmra.mrb[0].mxu0 %v830
  %v927 = vpop.f32.mrb[0].mxu0
  %v928 = vadd.f32 %v859, %v927
  %v929 = vpop.f32.mrb[0].mxu0
  %930 = vmatprep.mubr.f32.mxu0 0.0
  %931 = vmatmul.mubr.f32.gmra.mrb[0].mxu0 %v831
  %v932 = vpop.f32.mrb[0].mxu0
  %v933 = vadd.f32 %v859, %v932
  %v934 = vpop.f32.mrb[0].mxu0
  %935 = vmatprep.mubr.f32.mxu0 0.0
  %936 = vmatmul.mubr.f32.gmra.mrb[0].mxu0 %v832
  %v937 = vpop.f32.mrb[0].mxu0
  %v938 = vadd.f32 %v859, %v937
  %v939 = vpop.f32.mrb[0].mxu0
  %940 = vmatprep.mubr.f32.mxu0 0.0
  %941 = vmatmul.mubr.f32.gmra.mrb[0].mxu0 %v833
  %v942 = vpop.f32.mrb[0].mxu0
  %v943 = vadd.f32 %v859, %v942
  %v944 = vpop.f32.mrb[0].mxu0
  %945 = vmatprep.mubr.f32.mxu0 0.0
  %946 = vmatmul.mubr.f32.gmra.mrb[0].mxu0 %v834
  %v947 = vpop.f32.mrb[0].mxu0
  %v948 = vadd.f32 %v859, %v947
  %v949 = vpop.f32.mrb[0].mxu0
  %950 = vmatprep.mubr.f32.mxu0 0.0
  %951 = vmatmul.mubr.f32.gmra.mrb[0].mxu0 %v835
  %v952 = vpop.f32.mrb[0].mxu0
  %v953 = vadd.f32 %v859, %v952
  %v954 = vpop.f32.mrb[0].mxu0
  %955 = vmatprep.mubr.f32.mxu0 0.0
  %956 = vmatmul.mubr.f32.gmra.mrb[0].mxu0 %v836
  %v957 = vpop.f32.mrb[0].mxu0
  %v958 = vadd.f32 %v859, %v957
  %v959 = vpop.f32.mrb[0].mxu0
  %960 = vmatprep.mubr.f32.mxu0 0.0
  %961 = vmatmul.mubr.f32.gmra.mrb[0].mxu0 %v837
  %v962 = vpop.f32.mrb[0].mxu0
  %v963 = vadd.f32 %v859, %v962
  %v964 = vpop.f32.mrb[0].mxu0
  %965 = vdwg.mxu0
  %vm966 = vcmask 31744
  %967 = vst.msk [vmem:[%s7] sm:$0xff] %vm966, %v928
  %968 = vst.msk [vmem:[%s7 + $0x8] sm:$0xff] %vm966, %v933
  %969 = vst.msk [vmem:[%s7 + $0x10] sm:$0xff] %vm966, %v938
  %970 = vst.msk [vmem:[%s7 + $0x18] sm:$0xff] %vm966, %v943
  %971 = vst.msk [vmem:[%s7 + $0x20] sm:$0xff] %vm966, %v948
  %972 = vst.msk [vmem:[%s7 + $0x28] sm:$0xff] %vm966, %v953
  %973 = vst.msk [vmem:[%s7 + $0x30] sm:$0xff] %vm966, %v958
  %974 = vst.msk [vmem:[%s7 + $0x38] sm:$0xff] %vm966, %v963
  // Predicated region
  $region30: #{rnn_forward.1} parent=0 // pred_check
    _
  $region31: #{rnn_forward.1} parent=0 // pred_check_branch
    %976 = sbr.rel (0) target = $region33
  $region32: #{rnn_forward.1} parent=0 // pred_region
    _
  $region33: #{rnn_forward.1} parent=0 // pred_fallthru
    _
  // Predicated region
  $region34: #{rnn_forward.1} parent=0 // pred_check
    _
  $region35: #{rnn_forward.1} parent=0 // pred_check_branch
    %978 = sbr.rel (0) target = $region37
  $region36: #{rnn_forward.1} parent=0 // pred_region
    _
  $region37: #{rnn_forward.1} parent=0 // pred_fallthru
    _
  // Predicated region
  $region38: #{rnn_forward.1} parent=0 // pred_check
    _
  $region39: #{rnn_forward.1} parent=0 // pred_check_branch
    %980 = sbr.rel (0) target = $region41
  $region40: #{rnn_forward.1} parent=0 // pred_region
    _
  $region41: #{rnn_forward.1} parent=0 // pred_fallthru
    _
  // Predicated region
  $region42: #{rnn_forward.1} parent=0 // pred_check
    _
  $region43: #{rnn_forward.1} parent=0 // pred_check_branch
    %982 = sbr.rel (0) target = $region45
  $region44: #{rnn_forward.1} parent=0 // pred_region
    _
  $region45: #{rnn_forward.1} parent=0 // pred_fallthru
    _

</llo_original>
